<compile_context>
chip_gen: v6e
topology: v6e:2x2x1
jax: 0.10.0
libtpu: 0.0.40
codegen_flags: <defaults>
</compile_context>

<pallas_src>
import functools

import jax
import jax.numpy as jnp
from jax.experimental import pallas as pl
from jax.experimental.pallas import tpu as pltpu

_LANE = 128      # vreg lane width
_SUBLANE = 8     # vreg sublane count (f32)
_MAX_TILE_B = 256


def _round_up(x, m):
    return (x + m - 1) // m * m


def _mlp_kernel(x_ref, w1_ref, b1_ref, w2_ref, b2_ref, w3_ref, b3_ref,
                o_ref, h_ref):
    """Fused 3-layer MLP on one (TILE_B, F) batch tile.

    x_ref / w*_ref may be bf16 (MXU inputs); accumulation is f32; the bias+ReLU
    epilogue runs in f32 on the VPU; h_ref is a (TILE_B, 128) f32 VMEM scratch.
    """
    # Block 1: Linear + ReLU
    h = jnp.dot(x_ref[...], w1_ref[...], preferred_element_type=jnp.float32)
    h_ref[...] = jnp.maximum(h + b1_ref[...], 0.0)
    # Block 2: Linear + ReLU
    h = jnp.dot(h_ref[...].astype(w2_ref.dtype), w2_ref[...],
                preferred_element_type=jnp.float32)
    h_ref[...] = jnp.maximum(h + b2_ref[...], 0.0)
    # Block 3: Linear (norm='none', act='none')
    o = jnp.dot(h_ref[...].astype(w3_ref.dtype), w3_ref[...],
                preferred_element_type=jnp.float32)
    o_ref[...] = (o + b3_ref[...]).astype(o_ref.dtype)


@functools.partial(jax.jit, static_argnames=("compute_dtype",))
def mlp_forward(x_nchw, params, *, compute_dtype=jnp.bfloat16):
    """x_nchw: (B, C, H, W) float32.  params: (in,out) weights + (1,out) f32 biases."""
    b = x_nchw.shape[0]
    x = x_nchw.reshape(b, -1)          # x.view(x.size(0), -1)
    f = x.shape[1]

    w1, b1 = params["w1"], params["b1"]
    w2, b2 = params["w2"], params["b2"]
    w3, b3 = params["w3"], params["b3"]
    nf_mlp = w1.shape[1]
    nf_out = w3.shape[1]

    # ---- lane-dense padding of feature dims, sublane padding of batch -------
    f_p = _round_up(f, _LANE)
    mlp_p = _round_up(nf_mlp, _LANE)
    out_p = _round_up(nf_out, _LANE)
    tile_b = min(_MAX_TILE_B, _round_up(b, _SUBLANE))
    b_p = _round_up(b, tile_b)

    xp = jnp.pad(x, ((0, b_p - b), (0, f_p - f))).astype(compute_dtype)
    w1p = jnp.pad(w1, ((0, f_p - f), (0, mlp_p - nf_mlp))).astype(compute_dtype)
    w2p = jnp.pad(w2, ((0, mlp_p - nf_mlp), (0, mlp_p - nf_mlp))).astype(compute_dtype)
    w3p = jnp.pad(w3, ((0, mlp_p - nf_mlp), (0, out_p - nf_out))).astype(compute_dtype)
    b1p = jnp.pad(b1, ((0, 0), (0, mlp_p - nf_mlp)))   # biases stay f32 (VPU epilogue)
    b2p = jnp.pad(b2, ((0, 0), (0, mlp_p - nf_mlp)))
    b3p = jnp.pad(b3, ((0, 0), (0, out_p - nf_out)))

    grid = (b_p // tile_b,)

    itemsize = jnp.dtype(compute_dtype).itemsize
    flops = 2 * b_p * (f_p * mlp_p + mlp_p * mlp_p + mlp_p * out_p)
    bytes_accessed = (
        (b_p * f_p + f_p * mlp_p + mlp_p * mlp_p + mlp_p * out_p) * itemsize
        + (mlp_p + mlp_p + out_p) * 4          # biases (f32)
        + b_p * out_p * 4                      # output (f32)
    )

    out = pl.pallas_call(
        _mlp_kernel,
        out_shape=jax.ShapeDtypeStruct((b_p, out_p), jnp.float32),
        grid_spec=pltpu.PrefetchScalarGridSpec(
            num_scalar_prefetch=0,
            grid=grid,
            in_specs=[
                # activation tile marches over the batch grid
                pl.BlockSpec((tile_b, f_p), lambda i: (i, 0)),
                # weights / biases: constant index_map -> resident in VMEM, no re-DMA
                pl.BlockSpec((f_p, mlp_p), lambda i: (0, 0)),
                pl.BlockSpec((1, mlp_p), lambda i: (0, 0)),
                pl.BlockSpec((mlp_p, mlp_p), lambda i: (0, 0)),
                pl.BlockSpec((1, mlp_p), lambda i: (0, 0)),
                pl.BlockSpec((mlp_p, out_p), lambda i: (0, 0)),
                pl.BlockSpec((1, out_p), lambda i: (0, 0)),
            ],
            out_specs=pl.BlockSpec((tile_b, out_p), lambda i: (i, 0)),
            scratch_shapes=[pltpu.VMEM((tile_b, mlp_p), jnp.float32)],
        ),
        compiler_params=pltpu.CompilerParams(
            dimension_semantics=("parallel",),   # megacore sharding on v7x
        ),
        cost_estimate=pl.CostEstimate(
            flops=flops, transcendentals=0, bytes_accessed=bytes_accessed),
    )(xp, w1p, b1p, w2p, b2p, w3p, b3p)

    # Slice away batch / lane padding.
    return out[:b, :nf_out]


def init_params(key, nf_in, nf_out, nf_mlp):
    """Deterministic init mimicking nn.Linear default (uniform +-1/sqrt(fan_in)).
    Weights stored as (in_dim, out_dim); biases as (1, out_dim), all f32."""
    def linear(k, fan_in, fan_out):
        kw, kb = jax.random.split(k)
        bound = 1.0 / jnp.sqrt(fan_in)
        w = jax.random.uniform(kw, (fan_in, fan_out), jnp.float32, -bound, bound)
        bb = jax.random.uniform(kb, (1, fan_out), jnp.float32, -bound, bound)
        return w, bb

    k1, k2, k3 = jax.random.split(key, 3)
    w1, b1 = linear(k1, nf_in, nf_mlp)
    w2, b2 = linear(k2, nf_mlp, nf_mlp)
    w3, b3 = linear(k3, nf_mlp, nf_out)
    return {"w1": w1, "b1": b1, "w2": w2, "b2": b2, "w3": w3, "b3": b3}


def mlp_reference(x_nchw, params, compute_dtype=jnp.float32):
    """Plain-JAX reference of the PyTorch forward pass, matching the kernel's
    mixed precision (compute_dtype matmul inputs, f32 accumulation/epilogue)."""
    x = x_nchw.reshape(x_nchw.shape[0], -1).astype(compute_dtype)
    w1 = params["w1"].astype(compute_dtype)
    w2 = params["w2"].astype(compute_dtype)
    w3 = params["w3"].astype(compute_dtype)
    h = jnp.maximum(
        jnp.dot(x, w1, preferred_element_type=jnp.float32) + params["b1"], 0.0)
    h = jnp.maximum(
        jnp.dot(h.astype(compute_dtype), w2,
                preferred_element_type=jnp.float32) + params["b2"], 0.0)
    return (jnp.dot(h.astype(compute_dtype), w3,
                    preferred_element_type=jnp.float32) + params["b3"])


if __name__ == "__main__":
    key = jax.random.PRNGKey(0)
    kx, kp = jax.random.split(key)

    # Small shapes consistent with the module's forward (NCHW input, flattened).
    B, C, H, W = 2, 4, 16, 16
    nf_in = C * H * W          # 1024
    nf_mlp = 32
    nf_out = 8

    x = jax.random.normal(kx, (B, C, H, W), jnp.float32)
    params = init_params(kp, nf_in, nf_out, nf_mlp)

    # f32 path: numerically matches the PyTorch/XLA forward, tight tolerance.
    out_f32 = mlp_forward(x, params, compute_dtype=jnp.float32)
    jax.block_until_ready(out_f32)
    ref_f32 = mlp_reference(x, params, jnp.float32)
    assert out_f32.shape == (B, nf_out)
    assert jnp.allclose(out_f32, ref_f32, atol=1e-4, rtol=1e-4)

    # bf16 path (default on v6e/v7x): check against a matching mixed-precision
    # reference, and make sure it still tracks the exact f32 forward.
    out_bf16 = mlp_forward(x, params, compute_dtype=jnp.bfloat16)
    jax.block_until_ready(out_bf16)
    ref_bf16 = mlp_reference(x, params, jnp.bfloat16)
    assert out_bf16.shape == (B, nf_out)
    assert jnp.allclose(out_bf16, ref_bf16, atol=2e-2, rtol=2e-2)
    assert jnp.allclose(out_bf16, ref_f32, atol=5e-2, rtol=5e-2)

    print("KERNEL_OK")
</pallas_src>

<mosaic_0001>
module attributes {stable_mosaic.version = 11 : i64} {
  func.func @_mlp_kernel(%arg0: i32, %arg1: memref<8x1024xf32, #tpu.memory_space<vmem>>, %arg2: memref<1024x128xf32, #tpu.memory_space<vmem>>, %arg3: memref<1x128xf32, #tpu.memory_space<vmem>>, %arg4: memref<128x128xf32, #tpu.memory_space<vmem>>, %arg5: memref<1x128xf32, #tpu.memory_space<vmem>>, %arg6: memref<128x128xf32, #tpu.memory_space<vmem>>, %arg7: memref<1x128xf32, #tpu.memory_space<vmem>>, %arg8: memref<8x128xf32, #tpu.memory_space<vmem>>, %arg9: memref<8x128xf32, #tpu.memory_space<vmem>>) attributes {dimension_semantics = [#tpu.dimension_semantics<parallel>], iteration_bounds = array<i64: 1>, scalar_prefetch = 0 : i64, scratch_operands = 1 : i64, tpu.core_type = #tpu.core_type<tc>, window_params = [{transform_indices = @transform_0, window_bounds = array<i64: 8, 1024>}, {pipeline_mode = #tpu.pipeline_mode<synchronous>, transform_indices = @transform_1, window_bounds = array<i64: 1024, 128>}, {pipeline_mode = #tpu.pipeline_mode<synchronous>, transform_indices = @transform_2, window_bounds = array<i64: 1, 128>}, {pipeline_mode = #tpu.pipeline_mode<synchronous>, transform_indices = @transform_3, window_bounds = array<i64: 128, 128>}, {pipeline_mode = #tpu.pipeline_mode<synchronous>, transform_indices = @transform_4, window_bounds = array<i64: 1, 128>}, {pipeline_mode = #tpu.pipeline_mode<synchronous>, transform_indices = @transform_5, window_bounds = array<i64: 128, 128>}, {pipeline_mode = #tpu.pipeline_mode<synchronous>, transform_indices = @transform_6, window_bounds = array<i64: 1, 128>}, {transform_indices = @transform_7, window_bounds = array<i64: 8, 128>}]} {
    %c0 = arith.constant 0 : index
    %c0_0 = arith.constant 0 : index
    %0 = vector.load %arg1[%c0, %c0_0] : memref<8x1024xf32, #tpu.memory_space<vmem>>, vector<8x1024xf32>
    %c0_1 = arith.constant 0 : index
    %c0_2 = arith.constant 0 : index
    %1 = vector.load %arg2[%c0_1, %c0_2] : memref<1024x128xf32, #tpu.memory_space<vmem>>, vector<1024x128xf32>
    %cst = arith.constant dense<0.000000e+00> : vector<8x128xf32>
    %2 = tpu.matmul %0, %1, %cst {dimension_numbers = #tpu.dot_dimension_numbers<[1], [0], [0], [1], [0, 0, 1, 1], [], []>} : vector<8x1024xf32>, vector<1024x128xf32>, vector<8x128xf32> -> vector<8x128xf32>
    %c0_3 = arith.constant 0 : index
    %c0_4 = arith.constant 0 : index
    %3 = vector.load %arg3[%c0_3, %c0_4] : memref<1x128xf32, #tpu.memory_space<vmem>>, vector<1x128xf32>
    %4 = vector.broadcast %3 : vector<1x128xf32> to vector<8x128xf32>
    %5 = arith.addf %2, %4 : vector<8x128xf32>
    %cst_5 = arith.constant 0.000000e+00 : f32
    %6 = vector.broadcast %cst_5 : f32 to vector<8x128xf32>
    %7 = arith.maximumf %5, %6 : vector<8x128xf32>
    %c0_6 = arith.constant 0 : index
    %c0_7 = arith.constant 0 : index
    %8 = vector.load %arg9[%c0_6, %c0_7] : memref<8x128xf32, #tpu.memory_space<vmem>>, vector<8x128xf32>
    tpu.vector_store %arg9[%c0_6, %c0_7], %7 {strides = array<i32>} : memref<8x128xf32, #tpu.memory_space<vmem>>, vector<8x128xf32>,
    %c0_8 = arith.constant 0 : index
    %c0_9 = arith.constant 0 : index
    %9 = vector.load %arg9[%c0_8, %c0_9] : memref<8x128xf32, #tpu.memory_space<vmem>>, vector<8x128xf32>
    %c0_10 = arith.constant 0 : index
    %c0_11 = arith.constant 0 : index
    %10 = vector.load %arg4[%c0_10, %c0_11] : memref<128x128xf32, #tpu.memory_space<vmem>>, vector<128x128xf32>
    %cst_12 = arith.constant dense<0.000000e+00> : vector<8x128xf32>
    %11 = tpu.matmul %9, %10, %cst_12 {dimension_numbers = #tpu.dot_dimension_numbers<[1], [0], [0], [1], [0, 0, 1, 1], [], []>} : vector<8x128xf32>, vector<128x128xf32>, vector<8x128xf32> -> vector<8x128xf32>
    %c0_13 = arith.constant 0 : index
    %c0_14 = arith.constant 0 : index
    %12 = vector.load %arg5[%c0_13, %c0_14] : memref<1x128xf32, #tpu.memory_space<vmem>>, vector<1x128xf32>
    %13 = vector.broadcast %12 : vector<1x128xf32> to vector<8x128xf32>
    %14 = arith.addf %11, %13 : vector<8x128xf32>
    %cst_15 = arith.constant 0.000000e+00 : f32
    %15 = vector.broadcast %cst_15 : f32 to vector<8x128xf32>
    %16 = arith.maximumf %14, %15 : vector<8x128xf32>
    %c0_16 = arith.constant 0 : index
    %c0_17 = arith.constant 0 : index
    %17 = vector.load %arg9[%c0_16, %c0_17] : memref<8x128xf32, #tpu.memory_space<vmem>>, vector<8x128xf32>
    tpu.vector_store %arg9[%c0_16, %c0_17], %16 {strides = array<i32>} : memref<8x128xf32, #tpu.memory_space<vmem>>, vector<8x128xf32>,
    %c0_18 = arith.constant 0 : index
    %c0_19 = arith.constant 0 : index
    %18 = vector.load %arg9[%c0_18, %c0_19] : memref<8x128xf32, #tpu.memory_space<vmem>>, vector<8x128xf32>
    %c0_20 = arith.constant 0 : index
    %c0_21 = arith.constant 0 : index
    %19 = vector.load %arg6[%c0_20, %c0_21] : memref<128x128xf32, #tpu.memory_space<vmem>>, vector<128x128xf32>
    %cst_22 = arith.constant dense<0.000000e+00> : vector<8x128xf32>
    %20 = tpu.matmul %18, %19, %cst_22 {dimension_numbers = #tpu.dot_dimension_numbers<[1], [0], [0], [1], [0, 0, 1, 1], [], []>} : vector<8x128xf32>, vector<128x128xf32>, vector<8x128xf32> -> vector<8x128xf32>
    %c0_23 = arith.constant 0 : index
    %c0_24 = arith.constant 0 : index
    %21 = vector.load %arg7[%c0_23, %c0_24] : memref<1x128xf32, #tpu.memory_space<vmem>>, vector<1x128xf32>
    %22 = vector.broadcast %21 : vector<1x128xf32> to vector<8x128xf32>
    %23 = arith.addf %20, %22 : vector<8x128xf32>
    %c0_25 = arith.constant 0 : index
    %c0_26 = arith.constant 0 : index
    %24 = vector.load %arg8[%c0_25, %c0_26] : memref<8x128xf32, #tpu.memory_space<vmem>>, vector<8x128xf32>
    tpu.vector_store %arg8[%c0_25, %c0_26], %23 {strides = array<i32>} : memref<8x128xf32, #tpu.memory_space<vmem>>, vector<8x128xf32>,
    return
  }
  func.func @transform_0(%arg0: i32) -> (i32, i32) {
    %c0_i32 = arith.constant 0 : i32
    %c0_i32_0 = arith.constant 0 : i32
    return %arg0, %c0_i32 : i32, i32
  }
  func.func @transform_1(%arg0: i32) -> (i32, i32) {
    %c0_i32 = arith.constant 0 : i32
    %c0_i32_0 = arith.constant 0 : i32
    %c0_i32_1 = arith.constant 0 : i32
    return %c0_i32, %c0_i32_0 : i32, i32
  }
  func.func @transform_2(%arg0: i32) -> (i32, i32) {
    %c0_i32 = arith.constant 0 : i32
    %c0_i32_0 = arith.constant 0 : i32
    %c0_i32_1 = arith.constant 0 : i32
    return %c0_i32, %c0_i32_0 : i32, i32
  }
  func.func @transform_3(%arg0: i32) -> (i32, i32) {
    %c0_i32 = arith.constant 0 : i32
    %c0_i32_0 = arith.constant 0 : i32
    %c0_i32_1 = arith.constant 0 : i32
    return %c0_i32, %c0_i32_0 : i32, i32
  }
  func.func @transform_4(%arg0: i32) -> (i32, i32) {
    %c0_i32 = arith.constant 0 : i32
    %c0_i32_0 = arith.constant 0 : i32
    %c0_i32_1 = arith.constant 0 : i32
    return %c0_i32, %c0_i32_0 : i32, i32
  }
  func.func @transform_5(%arg0: i32) -> (i32, i32) {
    %c0_i32 = arith.constant 0 : i32
    %c0_i32_0 = arith.constant 0 : i32
    %c0_i32_1 = arith.constant 0 : i32
    return %c0_i32, %c0_i32_0 : i32, i32
  }
  func.func @transform_6(%arg0: i32) -> (i32, i32) {
    %c0_i32 = arith.constant 0 : i32
    %c0_i32_0 = arith.constant 0 : i32
    %c0_i32_1 = arith.constant 0 : i32
    return %c0_i32, %c0_i32_0 : i32, i32
  }
  func.func @transform_7(%arg0: i32) -> (i32, i32) {
    %c0_i32 = arith.constant 0 : i32
    %c0_i32_0 = arith.constant 0 : i32
    return %arg0, %c0_i32 : i32, i32
  }
}

</mosaic_0001>

<llo_original>
// kernel: mlp_forward.1
$region0: #{mlp_forward.1}
  #allocation0 [shape = 'u32[]', space=smem, size = 0x4, offset = 0x4, fixed_abs, tag = 'smem constant byte address 0x4 - core index']
  #allocation1 [shape = 'u32[144,128]{1,0:T(1,128)}', space=vmem, size = 0x12000, scoped, tag = 'internal scratch']
  #allocation2 [shape = 'f32[8,128]{1,0:T(8,128)}', space=vmem, size = 0x1000, scoped, tag = 'scratch operand']
  %s0 = inlined_call_operand.vmem [shape: f32[8,1024], index: 0, kind: input, shape index: {}]
  %s1 = inlined_call_operand.vmem [shape: f32[1024,128], index: 1, kind: input, shape index: {}]
  %s2 = inlined_call_operand.vmem [shape: f32[1,128], index: 2, kind: input, shape index: {}]
  %s3 = inlined_call_operand.vmem [shape: f32[128,128], index: 3, kind: input, shape index: {}]
  %s4 = inlined_call_operand.vmem [shape: f32[1,128], index: 4, kind: input, shape index: {}]
  %s5 = inlined_call_operand.vmem [shape: f32[128,128], index: 5, kind: input, shape index: {}]
  %s6 = inlined_call_operand.vmem [shape: f32[1,128], index: 6, kind: input, shape index: {}]
  %s7 = inlined_call_operand.vmem [shape: f32[8,128], index: 7, kind: output, shape index: {}]
  %s8 = sld [smem:[#allocation0]]
  $region38: #{mlp_forward.1} parent=0
    _
  %s10 = ssub.s32 1, %s8
  %s11 = scalar_select 0, %s10, %s8
  // Predicated region
  $region2: #{mlp_forward.1} parent=0 // pred_check
    _
  $region3: #{mlp_forward.1} parent=0 // pred_check_branch
    %13 = sbr.rel (0) target = $region5
  $region4: #{mlp_forward.1} parent=0 // pred_region
    _
  $region5: #{mlp_forward.1} parent=0 // pred_fallthru
    _
  // Predicated region
  $region6: #{mlp_forward.1} parent=0 // pred_check
    _
  $region7: #{mlp_forward.1} parent=0 // pred_check_branch
    %15 = sbr.rel (0) target = $region9
  $region8: #{mlp_forward.1} parent=0 // pred_region
    _
  $region9: #{mlp_forward.1} parent=0 // pred_fallthru
    _
  // Predicated region
  $region10: #{mlp_forward.1} parent=0 // pred_check
    _
  $region11: #{mlp_forward.1} parent=0 // pred_check_branch
    %17 = sbr.rel (0) target = $region13
  $region12: #{mlp_forward.1} parent=0 // pred_region
    _
  $region13: #{mlp_forward.1} parent=0 // pred_fallthru
    _
  // Predicated region
  $region14: #{mlp_forward.1} parent=0 // pred_check
    _
  $region15: #{mlp_forward.1} parent=0 // pred_check_branch
    %19 = sbr.rel (0) target = $region17
  $region16: #{mlp_forward.1} parent=0 // pred_region
    _
  $region17: #{mlp_forward.1} parent=0 // pred_fallthru
    _
  // Predicated region
  $region18: #{mlp_forward.1} parent=0 // pred_check
    _
  $region19: #{mlp_forward.1} parent=0 // pred_check_branch
    %21 = sbr.rel (0) target = $region21
  $region20: #{mlp_forward.1} parent=0 // pred_region
    _
  $region21: #{mlp_forward.1} parent=0 // pred_fallthru
    _
  // Predicated region
  $region22: #{mlp_forward.1} parent=0 // pred_check
    _
  $region23: #{mlp_forward.1} parent=0 // pred_check_branch
    %23 = sbr.rel (0) target = $region25
  $region24: #{mlp_forward.1} parent=0 // pred_region
    _
  $region25: #{mlp_forward.1} parent=0 // pred_fallthru
    _
  // Predicated region
  $region26: #{mlp_forward.1} parent=0 // pred_check
    _
  $region27: #{mlp_forward.1} parent=0 // pred_check_branch
    %25 = sbr.rel (0) target = $region29
  $region28: #{mlp_forward.1} parent=0 // pred_region
    _
  $region29: #{mlp_forward.1} parent=0 // pred_fallthru
    _
  %v26 = vld [vmem:[%s0] sm:$0xff]
  %v27 = vld [vmem:[%s0 + $0x8] sm:$0xff]
  %v28 = vld [vmem:[%s0 + $0x10] sm:$0xff]
  %v29 = vld [vmem:[%s0 + $0x18] sm:$0xff]
  %v30 = vld [vmem:[%s0 + $0x20] sm:$0xff]
  %v31 = vld [vmem:[%s0 + $0x28] sm:$0xff]
  %v32 = vld [vmem:[%s0 + $0x30] sm:$0xff]
  %v33 = vld [vmem:[%s0 + $0x38] sm:$0xff]
  %v34 = vld [vmem:[%s1] sm:$0xff]
  %v35 = vld [vmem:[%s1 + $0x8] sm:$0xff]
  %v36 = vld [vmem:[%s1 + $0x10] sm:$0xff]
  %v37 = vld [vmem:[%s1 + $0x18] sm:$0xff]
  %v38 = vld [vmem:[%s1 + $0x20] sm:$0xff]
  %v39 = vld [vmem:[%s1 + $0x28] sm:$0xff]
  %v40 = vld [vmem:[%s1 + $0x30] sm:$0xff]
  %v41 = vld [vmem:[%s1 + $0x38] sm:$0xff]
  %v42 = vld [vmem:[%s1 + $0x40] sm:$0xff]
  %v43 = vld [vmem:[%s1 + $0x48] sm:$0xff]
  %v44 = vld [vmem:[%s1 + $0x50] sm:$0xff]
  %v45 = vld [vmem:[%s1 + $0x58] sm:$0xff]
  %v46 = vld [vmem:[%s1 + $0x60] sm:$0xff]
  %v47 = vld [vmem:[%s1 + $0x68] sm:$0xff]
  %v48 = vld [vmem:[%s1 + $0x70] sm:$0xff]
  %v49 = vld [vmem:[%s1 + $0x78] sm:$0xff]
  %v50 = vld [vmem:[%s1 + $0x80] sm:$0xff]
  %v51 = vld [vmem:[%s1 + $0x88] sm:$0xff]
  %v52 = vld [vmem:[%s1 + $0x90] sm:$0xff]
  %v53 = vld [vmem:[%s1 + $0x98] sm:$0xff]
  %v54 = vld [vmem:[%s1 + $0xa0] sm:$0xff]
  %v55 = vld [vmem:[%s1 + $0xa8] sm:$0xff]
  %v56 = vld [vmem:[%s1 + $0xb0] sm:$0xff]
  %v57 = vld [vmem:[%s1 + $0xb8] sm:$0xff]
  %v58 = vld [vmem:[%s1 + $0xc0] sm:$0xff]
  %v59 = vld [vmem:[%s1 + $0xc8] sm:$0xff]
  %v60 = vld [vmem:[%s1 + $0xd0] sm:$0xff]
  %v61 = vld [vmem:[%s1 + $0xd8] sm:$0xff]
  %v62 = vld [vmem:[%s1 + $0xe0] sm:$0xff]
  %v63 = vld [vmem:[%s1 + $0xe8] sm:$0xff]
  %v64 = vld [vmem:[%s1 + $0xf0] sm:$0xff]
  %v65 = vld [vmem:[%s1 + $0xf8] sm:$0xff]
  %v66 = vld [vmem:[%s1 + $0x100] sm:$0xff]
  %v67 = vld [vmem:[%s1 + $0x108] sm:$0xff]
  %v68 = vld [vmem:[%s1 + $0x110] sm:$0xff]
  %v69 = vld [vmem:[%s1 + $0x118] sm:$0xff]
  %v70 = vld [vmem:[%s1 + $0x120] sm:$0xff]
  %v71 = vld [vmem:[%s1 + $0x128] sm:$0xff]
  %v72 = vld [vmem:[%s1 + $0x130] sm:$0xff]
  %v73 = vld [vmem:[%s1 + $0x138] sm:$0xff]
  %v74 = vld [vmem:[%s1 + $0x140] sm:$0xff]
  %v75 = vld [vmem:[%s1 + $0x148] sm:$0xff]
  %v76 = vld [vmem:[%s1 + $0x150] sm:$0xff]
  %v77 = vld [vmem:[%s1 + $0x158] sm:$0xff]
  %v78 = vld [vmem:[%s1 + $0x160] sm:$0xff]
  %v79 = vld [vmem:[%s1 + $0x168] sm:$0xff]
  %v80 = vld [vmem:[%s1 + $0x170] sm:$0xff]
  %v81 = vld [vmem:[%s1 + $0x178] sm:$0xff]
  %v82 = vld [vmem:[%s1 + $0x180] sm:$0xff]
  %v83 = vld [vmem:[%s1 + $0x188] sm:$0xff]
  %v84 = vld [vmem:[%s1 + $0x190] sm:$0xff]
  %v85 = vld [vmem:[%s1 + $0x198] sm:$0xff]
  %v86 = vld [vmem:[%s1 + $0x1a0] sm:$0xff]
  %v87 = vld [vmem:[%s1 + $0x1a8] sm:$0xff]
  %v88 = vld [vmem:[%s1 + $0x1b0] sm:$0xff]
  %v89 = vld [vmem:[%s1 + $0x1b8] sm:$0xff]
  %v90 = vld [vmem:[%s1 + $0x1c0] sm:$0xff]
  %v91 = vld [vmem:[%s1 + $0x1c8] sm:$0xff]
  %v92 = vld [vmem:[%s1 + $0x1d0] sm:$0xff]
  %v93 = vld [vmem:[%s1 + $0x1d8] sm:$0xff]
  %v94 = vld [vmem:[%s1 + $0x1e0] sm:$0xff]
  %v95 = vld [vmem:[%s1 + $0x1e8] sm:$0xff]
  %v96 = vld [vmem:[%s1 + $0x1f0] sm:$0xff]
  %v97 = vld [vmem:[%s1 + $0x1f8] sm:$0xff]
  %v98 = vld [vmem:[%s1 + $0x200] sm:$0xff]
  %v99 = vld [vmem:[%s1 + $0x208] sm:$0xff]
  %v100 = vld [vmem:[%s1 + $0x210] sm:$0xff]
  %v101 = vld [vmem:[%s1 + $0x218] sm:$0xff]
  %v102 = vld [vmem:[%s1 + $0x220] sm:$0xff]
  %v103 = vld [vmem:[%s1 + $0x228] sm:$0xff]
  %v104 = vld [vmem:[%s1 + $0x230] sm:$0xff]
  %v105 = vld [vmem:[%s1 + $0x238] sm:$0xff]
  %v106 = vld [vmem:[%s1 + $0x240] sm:$0xff]
  %v107 = vld [vmem:[%s1 + $0x248] sm:$0xff]
  %v108 = vld [vmem:[%s1 + $0x250] sm:$0xff]
  %v109 = vld [vmem:[%s1 + $0x258] sm:$0xff]
  %v110 = vld [vmem:[%s1 + $0x260] sm:$0xff]
  %v111 = vld [vmem:[%s1 + $0x268] sm:$0xff]
  %v112 = vld [vmem:[%s1 + $0x270] sm:$0xff]
  %v113 = vld [vmem:[%s1 + $0x278] sm:$0xff]
  %v114 = vld [vmem:[%s1 + $0x280] sm:$0xff]
  %v115 = vld [vmem:[%s1 + $0x288] sm:$0xff]
  %v116 = vld [vmem:[%s1 + $0x290] sm:$0xff]
  %v117 = vld [vmem:[%s1 + $0x298] sm:$0xff]
  %v118 = vld [vmem:[%s1 + $0x2a0] sm:$0xff]
  %v119 = vld [vmem:[%s1 + $0x2a8] sm:$0xff]
  %v120 = vld [vmem:[%s1 + $0x2b0] sm:$0xff]
  %v121 = vld [vmem:[%s1 + $0x2b8] sm:$0xff]
  %v122 = vld [vmem:[%s1 + $0x2c0] sm:$0xff]
  %v123 = vld [vmem:[%s1 + $0x2c8] sm:$0xff]
  %v124 = vld [vmem:[%s1 + $0x2d0] sm:$0xff]
  %v125 = vld [vmem:[%s1 + $0x2d8] sm:$0xff]
  %v126 = vld [vmem:[%s1 + $0x2e0] sm:$0xff]
  %v127 = vld [vmem:[%s1 + $0x2e8] sm:$0xff]
  %v128 = vld [vmem:[%s1 + $0x2f0] sm:$0xff]
  %v129 = vld [vmem:[%s1 + $0x2f8] sm:$0xff]
  %v130 = vld [vmem:[%s1 + $0x300] sm:$0xff]
  %v131 = vld [vmem:[%s1 + $0x308] sm:$0xff]
  %v132 = vld [vmem:[%s1 + $0x310] sm:$0xff]
  %v133 = vld [vmem:[%s1 + $0x318] sm:$0xff]
  %v134 = vld [vmem:[%s1 + $0x320] sm:$0xff]
  %v135 = vld [vmem:[%s1 + $0x328] sm:$0xff]
  %v136 = vld [vmem:[%s1 + $0x330] sm:$0xff]
  %v137 = vld [vmem:[%s1 + $0x338] sm:$0xff]
  %v138 = vld [vmem:[%s1 + $0x340] sm:$0xff]
  %v139 = vld [vmem:[%s1 + $0x348] sm:$0xff]
  %v140 = vld [vmem:[%s1 + $0x350] sm:$0xff]
  %v141 = vld [vmem:[%s1 + $0x358] sm:$0xff]
  %v142 = vld [vmem:[%s1 + $0x360] sm:$0xff]
  %v143 = vld [vmem:[%s1 + $0x368] sm:$0xff]
  %v144 = vld [vmem:[%s1 + $0x370] sm:$0xff]
  %v145 = vld [vmem:[%s1 + $0x378] sm:$0xff]
  %v146 = vld [vmem:[%s1 + $0x380] sm:$0xff]
  %v147 = vld [vmem:[%s1 + $0x388] sm:$0xff]
  %v148 = vld [vmem:[%s1 + $0x390] sm:$0xff]
  %v149 = vld [vmem:[%s1 + $0x398] sm:$0xff]
  %v150 = vld [vmem:[%s1 + $0x3a0] sm:$0xff]
  %v151 = vld [vmem:[%s1 + $0x3a8] sm:$0xff]
  %v152 = vld [vmem:[%s1 + $0x3b0] sm:$0xff]
  %v153 = vld [vmem:[%s1 + $0x3b8] sm:$0xff]
  %v154 = vld [vmem:[%s1 + $0x3c0] sm:$0xff]
  %v155 = vld [vmem:[%s1 + $0x3c8] sm:$0xff]
  %v156 = vld [vmem:[%s1 + $0x3d0] sm:$0xff]
  %v157 = vld [vmem:[%s1 + $0x3d8] sm:$0xff]
  %v158 = vld [vmem:[%s1 + $0x3e0] sm:$0xff]
  %v159 = vld [vmem:[%s1 + $0x3e8] sm:$0xff]
  %v160 = vld [vmem:[%s1 + $0x3f0] sm:$0xff]
  %v161 = vld [vmem:[%s1 + $0x3f8] sm:$0xff]
  %v162 = vld [vmem:[%s2] sm:$0x1]
  %v164 = vlaneseq
  %v165 = vshrl.u32 %v164, 7
  %v166 = vsub.s32 0, %v165
  %v167 = vrot.slane %v162, %v166
  %169 = vmatprep.subr.mxu0 0.0
  %170 = vmatpush1.msra.mxu0 %v49
  %171 = vmatprep.subr.mxu0 0.0
  %172 = vmatpush1.msra.mxu0 %v48
  %173 = vmatprep.subr.mxu0 0.0
  %174 = vmatpush1.msra.mxu0 %v47
  %175 = vmatprep.subr.mxu0 0.0
  %176 = vmatpush1.msra.mxu0 %v46
  %177 = vmatprep.subr.mxu0 0.0
  %178 = vmatpush1.msra.mxu0 %v45
  %179 = vmatprep.subr.mxu0 0.0
  %180 = vmatpush1.msra.mxu0 %v44
  %181 = vmatprep.subr.mxu0 0.0
  %182 = vmatpush1.msra.mxu0 %v43
  %183 = vmatprep.subr.mxu0 0.0
  %184 = vmatpush1.msra.mxu0 %v42
  %185 = vmatprep.subr.mxu0 0.0
  %186 = vmatpush1.msra.mxu0 %v41
  %187 = vmatprep.subr.mxu0 0.0
  %188 = vmatpush1.msra.mxu0 %v40
  %189 = vmatprep.subr.mxu0 0.0
  %190 = vmatpush1.msra.mxu0 %v39
  %191 = vmatprep.subr.mxu0 0.0
  %192 = vmatpush1.msra.mxu0 %v38
  %193 = vmatprep.subr.mxu0 0.0
  %194 = vmatpush1.msra.mxu0 %v37
  %195 = vmatprep.subr.mxu0 0.0
  %196 = vmatpush1.msra.mxu0 %v36
  %197 = vmatprep.subr.mxu0 0.0
  %198 = vmatpush1.msra.mxu0 %v35
  %199 = vmatprep.subr.mxu0 0.0
  %200 = vmatpush1.msra.mxu0 %v34
  %201 = vmatprep.subr.mxu0 0.0
  %202 = vmatpush2.msra.mxu0 %v65
  %203 = vmatprep.subr.mxu0 0.0
  %204 = vmatpush2.msra.mxu0 %v64
  %205 = vmatprep.subr.mxu0 0.0
  %206 = vmatpush2.msra.mxu0 %v63
  %207 = vmatprep.subr.mxu0 0.0
  %208 = vmatpush2.msra.mxu0 %v62
  %209 = vmatprep.subr.mxu0 0.0
  %210 = vmatpush2.msra.mxu0 %v61
  %211 = vmatprep.subr.mxu0 0.0
  %212 = vmatpush2.msra.mxu0 %v60
  %213 = vmatprep.subr.mxu0 0.0
  %214 = vmatpush2.msra.mxu0 %v59
  %215 = vmatprep.subr.mxu0 0.0
  %216 = vmatpush2.msra.mxu0 %v58
  %217 = vmatprep.subr.mxu0 0.0
  %218 = vmatpush2.msra.mxu0 %v57
  %219 = vmatprep.subr.mxu0 0.0
  %220 = vmatpush2.msra.mxu0 %v56
  %221 = vmatprep.subr.mxu0 0.0
  %222 = vmatpush2.msra.mxu0 %v55
  %223 = vmatprep.subr.mxu0 0.0
  %224 = vmatpush2.msra.mxu0 %v54
  %225 = vmatprep.subr.mxu0 0.0
  %226 = vmatpush2.msra.mxu0 %v53
  %227 = vmatprep.subr.mxu0 0.0
  %228 = vmatpush2.msra.mxu0 %v52
  %229 = vmatprep.subr.mxu0 0.0
  %230 = vmatpush2.msra.mxu0 %v51
  %231 = vmatprep.subr.mxu0 0.0
  %232 = vmatpush2.msra.mxu0 %v50
  %233 = vmatprep.mubr.f32.mxu0 %v27
  %234 = vmatmul.mubr.f32.gmra.mxu0 %v26
  %v235 = vpop.f32.mrf.mxu0
  %v236 = vadd.f32 %v167, %v235
  %v237 = vpop.f32.mrf.mxu0
  %238 = vdwg.mxu0
  %239 = vmatprep.subr.mxu0 0.0
  %240 = vmatpush1.msra.mxu0 %v81
  %241 = vmatprep.subr.mxu0 0.0
  %242 = vmatpush1.msra.mxu0 %v80
  %243 = vmatprep.subr.mxu0 0.0
  %244 = vmatpush1.msra.mxu0 %v79
  %245 = vmatprep.subr.mxu0 0.0
  %246 = vmatpush1.msra.mxu0 %v78
  %247 = vmatprep.subr.mxu0 0.0
  %248 = vmatpush1.msra.mxu0 %v77
  %249 = vmatprep.subr.mxu0 0.0
  %250 = vmatpush1.msra.mxu0 %v76
  %251 = vmatprep.subr.mxu0 0.0
  %252 = vmatpush1.msra.mxu0 %v75
  %253 = vmatprep.subr.mxu0 0.0
  %254 = vmatpush1.msra.mxu0 %v74
  %255 = vmatprep.subr.mxu0 0.0
  %256 = vmatpush1.msra.mxu0 %v73
  %257 = vmatprep.subr.mxu0 0.0
  %258 = vmatpush1.msra.mxu0 %v72
  %259 = vmatprep.subr.mxu0 0.0
  %260 = vmatpush1.msra.mxu0 %v71
  %261 = vmatprep.subr.mxu0 0.0
  %262 = vmatpush1.msra.mxu0 %v70
  %263 = vmatprep.subr.mxu0 0.0
  %264 = vmatpush1.msra.mxu0 %v69
  %265 = vmatprep.subr.mxu0 0.0
  %266 = vmatpush1.msra.mxu0 %v68
  %267 = vmatprep.subr.mxu0 0.0
  %268 = vmatpush1.msra.mxu0 %v67
  %269 = vmatprep.subr.mxu0 0.0
  %270 = vmatpush1.msra.mxu0 %v66
  %271 = vmatprep.subr.mxu0 0.0
  %272 = vmatpush2.msra.mxu0 %v97
  %273 = vmatprep.subr.mxu0 0.0
  %274 = vmatpush2.msra.mxu0 %v96
  %275 = vmatprep.subr.mxu0 0.0
  %276 = vmatpush2.msra.mxu0 %v95
  %277 = vmatprep.subr.mxu0 0.0
  %278 = vmatpush2.msra.mxu0 %v94
  %279 = vmatprep.subr.mxu0 0.0
  %280 = vmatpush2.msra.mxu0 %v93
  %281 = vmatprep.subr.mxu0 0.0
  %282 = vmatpush2.msra.mxu0 %v92
  %283 = vmatprep.subr.mxu0 0.0
  %284 = vmatpush2.msra.mxu0 %v91
  %285 = vmatprep.subr.mxu0 0.0
  %286 = vmatpush2.msra.mxu0 %v90
  %287 = vmatprep.subr.mxu0 0.0
  %288 = vmatpush2.msra.mxu0 %v89
  %289 = vmatprep.subr.mxu0 0.0
  %290 = vmatpush2.msra.mxu0 %v88
  %291 = vmatprep.subr.mxu0 0.0
  %292 = vmatpush2.msra.mxu0 %v87
  %293 = vmatprep.subr.mxu0 0.0
  %294 = vmatpush2.msra.mxu0 %v86
  %295 = vmatprep.subr.mxu0 0.0
  %296 = vmatpush2.msra.mxu0 %v85
  %297 = vmatprep.subr.mxu0 0.0
  %298 = vmatpush2.msra.mxu0 %v84
  %299 = vmatprep.subr.mxu0 0.0
  %300 = vmatpush2.msra.mxu0 %v83
  %301 = vmatprep.subr.mxu0 0.0
  %302 = vmatpush2.msra.mxu0 %v82
  %303 = vmatprep.mubr.f32.mxu0 %v29
  %304 = vmatmul.mubr.f32.gmra.mxu0 %v28
  %v305 = vpop.f32.mrf.mxu0
  %v306 = vadd.f32 %v236, %v305
  %v307 = vpop.f32.mrf.mxu0
  %308 = vdwg.mxu0
  %309 = vmatprep.subr.mxu0 0.0
  %310 = vmatpush1.msra.mxu0 %v113
  %311 = vmatprep.subr.mxu0 0.0
  %312 = vmatpush1.msra.mxu0 %v112
  %313 = vmatprep.subr.mxu0 0.0
  %314 = vmatpush1.msra.mxu0 %v111
  %315 = vmatprep.subr.mxu0 0.0
  %316 = vmatpush1.msra.mxu0 %v110
  %317 = vmatprep.subr.mxu0 0.0
  %318 = vmatpush1.msra.mxu0 %v109
  %319 = vmatprep.subr.mxu0 0.0
  %320 = vmatpush1.msra.mxu0 %v108
  %321 = vmatprep.subr.mxu0 0.0
  %322 = vmatpush1.msra.mxu0 %v107
  %323 = vmatprep.subr.mxu0 0.0
  %324 = vmatpush1.msra.mxu0 %v106
  %325 = vmatprep.subr.mxu0 0.0
  %326 = vmatpush1.msra.mxu0 %v105
  %327 = vmatprep.subr.mxu0 0.0
  %328 = vmatpush1.msra.mxu0 %v104
  %329 = vmatprep.subr.mxu0 0.0
  %330 = vmatpush1.msra.mxu0 %v103
  %331 = vmatprep.subr.mxu0 0.0
  %332 = vmatpush1.msra.mxu0 %v102
  %333 = vmatprep.subr.mxu0 0.0
  %334 = vmatpush1.msra.mxu0 %v101
  %335 = vmatprep.subr.mxu0 0.0
  %336 = vmatpush1.msra.mxu0 %v100
  %337 = vmatprep.subr.mxu0 0.0
  %338 = vmatpush1.msra.mxu0 %v99
  %339 = vmatprep.subr.mxu0 0.0
  %340 = vmatpush1.msra.mxu0 %v98
  %341 = vmatprep.subr.mxu0 0.0
  %342 = vmatpush2.msra.mxu0 %v129
  %343 = vmatprep.subr.mxu0 0.0
  %344 = vmatpush2.msra.mxu0 %v128
  %345 = vmatprep.subr.mxu0 0.0
  %346 = vmatpush2.msra.mxu0 %v127
  %347 = vmatprep.subr.mxu0 0.0
  %348 = vmatpush2.msra.mxu0 %v126
  %349 = vmatprep.subr.mxu0 0.0
  %350 = vmatpush2.msra.mxu0 %v125
  %351 = vmatprep.subr.mxu0 0.0
  %352 = vmatpush2.msra.mxu0 %v124
  %353 = vmatprep.subr.mxu0 0.0
  %354 = vmatpush2.msra.mxu0 %v123
  %355 = vmatprep.subr.mxu0 0.0
  %356 = vmatpush2.msra.mxu0 %v122
  %357 = vmatprep.subr.mxu0 0.0
  %358 = vmatpush2.msra.mxu0 %v121
  %359 = vmatprep.subr.mxu0 0.0
  %360 = vmatpush2.msra.mxu0 %v120
  %361 = vmatprep.subr.mxu0 0.0
  %362 = vmatpush2.msra.mxu0 %v119
  %363 = vmatprep.subr.mxu0 0.0
  %364 = vmatpush2.msra.mxu0 %v118
  %365 = vmatprep.subr.mxu0 0.0
  %366 = vmatpush2.msra.mxu0 %v117
  %367 = vmatprep.subr.mxu0 0.0
  %368 = vmatpush2.msra.mxu0 %v116
  %369 = vmatprep.subr.mxu0 0.0
  %370 = vmatpush2.msra.mxu0 %v115
  %371 = vmatprep.subr.mxu0 0.0
  %372 = vmatpush2.msra.mxu0 %v114
  %373 = vmatprep.mubr.f32.mxu0 %v31
  %374 = vmatmul.mubr.f32.gmra.mxu0 %v30
  %v375 = vpop.f32.mrf.mxu0
  %v376 = vadd.f32 %v306, %v375
  %v377 = vpop.f32.mrf.mxu0
  %378 = vdwg.mxu0
  %379 = vmatprep.subr.mxu0 0.0
  %380 = vmatpush1.msra.mxu0 %v145
  %381 = vmatprep.subr.mxu0 0.0
  %382 = vmatpush1.msra.mxu0 %v144
  %383 = vmatprep.subr.mxu0 0.0
  %384 = vmatpush1.msra.mxu0 %v143
  %385 = vmatprep.subr.mxu0 0.0
  %386 = vmatpush1.msra.mxu0 %v142
  %387 = vmatprep.subr.mxu0 0.0
  %388 = vmatpush1.msra.mxu0 %v141
  %389 = vmatprep.subr.mxu0 0.0
  %390 = vmatpush1.msra.mxu0 %v140
  %391 = vmatprep.subr.mxu0 0.0
  %392 = vmatpush1.msra.mxu0 %v139
  %393 = vmatprep.subr.mxu0 0.0
  %394 = vmatpush1.msra.mxu0 %v138
  %395 = vmatprep.subr.mxu0 0.0
  %396 = vmatpush1.msra.mxu0 %v137
  %397 = vmatprep.subr.mxu0 0.0
  %398 = vmatpush1.msra.mxu0 %v136
  %399 = vmatprep.subr.mxu0 0.0
  %400 = vmatpush1.msra.mxu0 %v135
  %401 = vmatprep.subr.mxu0 0.0
  %402 = vmatpush1.msra.mxu0 %v134
  %403 = vmatprep.subr.mxu0 0.0
  %404 = vmatpush1.msra.mxu0 %v133
  %405 = vmatprep.subr.mxu0 0.0
  %406 = vmatpush1.msra.mxu0 %v132
  %407 = vmatprep.subr.mxu0 0.0
  %408 = vmatpush1.msra.mxu0 %v131
  %409 = vmatprep.subr.mxu0 0.0
  %410 = vmatpush1.msra.mxu0 %v130
  %411 = vmatprep.subr.mxu0 0.0
  %412 = vmatpush2.msra.mxu0 %v161
  %413 = vmatprep.subr.mxu0 0.0
  %414 = vmatpush2.msra.mxu0 %v160
  %415 = vmatprep.subr.mxu0 0.0
  %416 = vmatpush2.msra.mxu0 %v159
  %417 = vmatprep.subr.mxu0 0.0
  %418 = vmatpush2.msra.mxu0 %v158
  %419 = vmatprep.subr.mxu0 0.0
  %420 = vmatpush2.msra.mxu0 %v157
  %421 = vmatprep.subr.mxu0 0.0
  %422 = vmatpush2.msra.mxu0 %v156
  %423 = vmatprep.subr.mxu0 0.0
  %424 = vmatpush2.msra.mxu0 %v155
  %425 = vmatprep.subr.mxu0 0.0
  %426 = vmatpush2.msra.mxu0 %v154
  %427 = vmatprep.subr.mxu0 0.0
  %428 = vmatpush2.msra.mxu0 %v153
  %429 = vmatprep.subr.mxu0 0.0
  %430 = vmatpush2.msra.mxu0 %v152
  %431 = vmatprep.subr.mxu0 0.0
  %432 = vmatpush2.msra.mxu0 %v151
  %433 = vmatprep.subr.mxu0 0.0
  %434 = vmatpush2.msra.mxu0 %v150
  %435 = vmatprep.subr.mxu0 0.0
  %436 = vmatpush2.msra.mxu0 %v149
  %437 = vmatprep.subr.mxu0 0.0
  %438 = vmatpush2.msra.mxu0 %v148
  %439 = vmatprep.subr.mxu0 0.0
  %440 = vmatpush2.msra.mxu0 %v147
  %441 = vmatprep.subr.mxu0 0.0
  %442 = vmatpush2.msra.mxu0 %v146
  %443 = vmatprep.mubr.f32.mxu0 %v33
  %444 = vmatmul.mubr.f32.gmra.mxu0 %v32
  %v445 = vpop.f32.mrf.mxu0
  %v446 = vadd.f32 %v376, %v445
  %v447 = vpop.f32.mrf.mxu0
  %448 = vdwg.mxu0
  %v449 = vmax.f32 %v446, 0.0
  %450 = vst [vmem:[#allocation2] sm:$0xff] %v449
  %v451 = vld [vmem:[#allocation2] sm:$0xff]
  %v452 = vld [vmem:[%s3] sm:$0xff]
  %v453 = vld [vmem:[%s3 + $0x8] sm:$0xff]
  %v454 = vld [vmem:[%s3 + $0x10] sm:$0xff]
  %v455 = vld [vmem:[%s3 + $0x18] sm:$0xff]
  %v456 = vld [vmem:[%s3 + $0x20] sm:$0xff]
  %v457 = vld [vmem:[%s3 + $0x28] sm:$0xff]
  %v458 = vld [vmem:[%s3 + $0x30] sm:$0xff]
  %v459 = vld [vmem:[%s3 + $0x38] sm:$0xff]
  %v460 = vld [vmem:[%s3 + $0x40] sm:$0xff]
  %v461 = vld [vmem:[%s3 + $0x48] sm:$0xff]
  %v462 = vld [vmem:[%s3 + $0x50] sm:$0xff]
  %v463 = vld [vmem:[%s3 + $0x58] sm:$0xff]
  %v464 = vld [vmem:[%s3 + $0x60] sm:$0xff]
  %v465 = vld [vmem:[%s3 + $0x68] sm:$0xff]
  %v466 = vld [vmem:[%s3 + $0x70] sm:$0xff]
  %v467 = vld [vmem:[%s3 + $0x78] sm:$0xff]
  %v468 = vld [vmem:[%s4] sm:$0x1]
  %v470 = vlaneseq
  %v471 = vshrl.u32 %v470, 7
  %v472 = vsub.s32 0, %v471
  %v473 = vrot.slane %v468, %v472
  %475 = vmatprep.subr.mxu0 0.0
  %476 = vmatpush1.msra.mxu0 %v467
  %477 = vmatprep.subr.mxu0 0.0
  %478 = vmatpush1.msra.mxu0 %v466
  %479 = vmatprep.subr.mxu0 0.0
  %480 = vmatpush1.msra.mxu0 %v465
  %481 = vmatprep.subr.mxu0 0.0
  %482 = vmatpush1.msra.mxu0 %v464
  %483 = vmatprep.subr.mxu0 0.0
  %484 = vmatpush1.msra.mxu0 %v463
  %485 = vmatprep.subr.mxu0 0.0
  %486 = vmatpush1.msra.mxu0 %v462
  %487 = vmatprep.subr.mxu0 0.0
  %488 = vmatpush1.msra.mxu0 %v461
  %489 = vmatprep.subr.mxu0 0.0
  %490 = vmatpush1.msra.mxu0 %v460
  %491 = vmatprep.subr.mxu0 0.0
  %492 = vmatpush1.msra.mxu0 %v459
  %493 = vmatprep.subr.mxu0 0.0
  %494 = vmatpush1.msra.mxu0 %v458
  %495 = vmatprep.subr.mxu0 0.0
  %496 = vmatpush1.msra.mxu0 %v457
  %497 = vmatprep.subr.mxu0 0.0
  %498 = vmatpush1.msra.mxu0 %v456
  %499 = vmatprep.subr.mxu0 0.0
  %500 = vmatpush1.msra.mxu0 %v455
  %501 = vmatprep.subr.mxu0 0.0
  %502 = vmatpush1.msra.mxu0 %v454
  %503 = vmatprep.subr.mxu0 0.0
  %504 = vmatpush1.msra.mxu0 %v453
  %505 = vmatprep.subr.mxu0 0.0
  %506 = vmatpush1.msra.mxu0 %v452
  %507 = vmatprep.subr.mxu0 0.0
  %508 = vmatpush2.msra.mxu0 0.0
  %509 = vmatprep.subr.mxu0 0.0
  %510 = vmatpush2.msra.mxu0 0.0
  %511 = vmatprep.subr.mxu0 0.0
  %512 = vmatpush2.msra.mxu0 0.0
  %513 = vmatprep.subr.mxu0 0.0
  %514 = vmatpush2.msra.mxu0 0.0
  %515 = vmatprep.subr.mxu0 0.0
  %516 = vmatpush2.msra.mxu0 0.0
  %517 = vmatprep.subr.mxu0 0.0
  %518 = vmatpush2.msra.mxu0 0.0
  %519 = vmatprep.subr.mxu0 0.0
  %520 = vmatpush2.msra.mxu0 0.0
  %521 = vmatprep.subr.mxu0 0.0
  %522 = vmatpush2.msra.mxu0 0.0
  %523 = vmatprep.subr.mxu0 0.0
  %524 = vmatpush2.msra.mxu0 0.0
  %525 = vmatprep.subr.mxu0 0.0
  %526 = vmatpush2.msra.mxu0 0.0
  %527 = vmatprep.subr.mxu0 0.0
  %528 = vmatpush2.msra.mxu0 0.0
  %529 = vmatprep.subr.mxu0 0.0
  %530 = vmatpush2.msra.mxu0 0.0
  %531 = vmatprep.subr.mxu0 0.0
  %532 = vmatpush2.msra.mxu0 0.0
  %533 = vmatprep.subr.mxu0 0.0
  %534 = vmatpush2.msra.mxu0 0.0
  %535 = vmatprep.subr.mxu0 0.0
  %536 = vmatpush2.msra.mxu0 0.0
  %537 = vmatprep.subr.mxu0 0.0
  %538 = vmatpush2.msra.mxu0 0.0
  %539 = vmatprep.mubr.f32.mxu0 0.0
  %540 = vmatmul.mubr.f32.gmra.mxu0 %v451
  %v541 = vpop.f32.mrf.mxu0
  %v542 = vadd.f32 %v473, %v541
  %v543 = vpop.f32.mrf.mxu0
  %544 = vdwg.mxu0
  %v545 = vmax.f32 %v542, 0.0
  %546 = vst [vmem:[#allocation2] sm:$0xff] %v545
  %v547 = vld [vmem:[#allocation2] sm:$0xff]
  %v548 = vld [vmem:[%s5] sm:$0xff]
  %v549 = vld [vmem:[%s5 + $0x8] sm:$0xff]
  %v550 = vld [vmem:[%s5 + $0x10] sm:$0xff]
  %v551 = vld [vmem:[%s5 + $0x18] sm:$0xff]
  %v552 = vld [vmem:[%s5 + $0x20] sm:$0xff]
  %v553 = vld [vmem:[%s5 + $0x28] sm:$0xff]
  %v554 = vld [vmem:[%s5 + $0x30] sm:$0xff]
  %v555 = vld [vmem:[%s5 + $0x38] sm:$0xff]
  %v556 = vld [vmem:[%s5 + $0x40] sm:$0xff]
  %v557 = vld [vmem:[%s5 + $0x48] sm:$0xff]
  %v558 = vld [vmem:[%s5 + $0x50] sm:$0xff]
  %v559 = vld [vmem:[%s5 + $0x58] sm:$0xff]
  %v560 = vld [vmem:[%s5 + $0x60] sm:$0xff]
  %v561 = vld [vmem:[%s5 + $0x68] sm:$0xff]
  %v562 = vld [vmem:[%s5 + $0x70] sm:$0xff]
  %v563 = vld [vmem:[%s5 + $0x78] sm:$0xff]
  %v564 = vld [vmem:[%s6] sm:$0x1]
  %v566 = vlaneseq
  %v567 = vshrl.u32 %v566, 7
  %v568 = vsub.s32 0, %v567
  %v569 = vrot.slane %v564, %v568
  %571 = vmatprep.subr.mxu0 0.0
  %572 = vmatpush1.msra.mxu0 %v563
  %573 = vmatprep.subr.mxu0 0.0
  %574 = vmatpush1.msra.mxu0 %v562
  %575 = vmatprep.subr.mxu0 0.0
  %576 = vmatpush1.msra.mxu0 %v561
  %577 = vmatprep.subr.mxu0 0.0
  %578 = vmatpush1.msra.mxu0 %v560
  %579 = vmatprep.subr.mxu0 0.0
  %580 = vmatpush1.msra.mxu0 %v559
  %581 = vmatprep.subr.mxu0 0.0
  %582 = vmatpush1.msra.mxu0 %v558
  %583 = vmatprep.subr.mxu0 0.0
  %584 = vmatpush1.msra.mxu0 %v557
  %585 = vmatprep.subr.mxu0 0.0
  %586 = vmatpush1.msra.mxu0 %v556
  %587 = vmatprep.subr.mxu0 0.0
  %588 = vmatpush1.msra.mxu0 %v555
  %589 = vmatprep.subr.mxu0 0.0
  %590 = vmatpush1.msra.mxu0 %v554
  %591 = vmatprep.subr.mxu0 0.0
  %592 = vmatpush1.msra.mxu0 %v553
  %593 = vmatprep.subr.mxu0 0.0
  %594 = vmatpush1.msra.mxu0 %v552
  %595 = vmatprep.subr.mxu0 0.0
  %596 = vmatpush1.msra.mxu0 %v551
  %597 = vmatprep.subr.mxu0 0.0
  %598 = vmatpush1.msra.mxu0 %v550
  %599 = vmatprep.subr.mxu0 0.0
  %600 = vmatpush1.msra.mxu0 %v549
  %601 = vmatprep.subr.mxu0 0.0
  %602 = vmatpush1.msra.mxu0 %v548
  %603 = vmatprep.subr.mxu0 0.0
  %604 = vmatpush2.msra.mxu0 0.0
  %605 = vmatprep.subr.mxu0 0.0
  %606 = vmatpush2.msra.mxu0 0.0
  %607 = vmatprep.subr.mxu0 0.0
  %608 = vmatpush2.msra.mxu0 0.0
  %609 = vmatprep.subr.mxu0 0.0
  %610 = vmatpush2.msra.mxu0 0.0
  %611 = vmatprep.subr.mxu0 0.0
  %612 = vmatpush2.msra.mxu0 0.0
  %613 = vmatprep.subr.mxu0 0.0
  %614 = vmatpush2.msra.mxu0 0.0
  %615 = vmatprep.subr.mxu0 0.0
  %616 = vmatpush2.msra.mxu0 0.0
  %617 = vmatprep.subr.mxu0 0.0
  %618 = vmatpush2.msra.mxu0 0.0
  %619 = vmatprep.subr.mxu0 0.0
  %620 = vmatpush2.msra.mxu0 0.0
  %621 = vmatprep.subr.mxu0 0.0
  %622 = vmatpush2.msra.mxu0 0.0
  %623 = vmatprep.subr.mxu0 0.0
  %624 = vmatpush2.msra.mxu0 0.0
  %625 = vmatprep.subr.mxu0 0.0
  %626 = vmatpush2.msra.mxu0 0.0
  %627 = vmatprep.subr.mxu0 0.0
  %628 = vmatpush2.msra.mxu0 0.0
  %629 = vmatprep.subr.mxu0 0.0
  %630 = vmatpush2.msra.mxu0 0.0
  %631 = vmatprep.subr.mxu0 0.0
  %632 = vmatpush2.msra.mxu0 0.0
  %633 = vmatprep.subr.mxu0 0.0
  %634 = vmatpush2.msra.mxu0 0.0
  %635 = vmatprep.mubr.f32.mxu0 0.0
  %636 = vmatmul.mubr.f32.gmra.mxu0 %v547
  %v637 = vpop.f32.mrf.mxu0
  %v638 = vadd.f32 %v569, %v637
  %v639 = vpop.f32.mrf.mxu0
  %640 = vdwg.mxu0
  %641 = vst [vmem:[%s7] sm:$0xff] %v638
  // Predicated region
  $region30: #{mlp_forward.1} parent=0 // pred_check
    _
  $region31: #{mlp_forward.1} parent=0 // pred_check_branch
    %643 = sbr.rel (0) target = $region33
  $region32: #{mlp_forward.1} parent=0 // pred_region
    _
  $region33: #{mlp_forward.1} parent=0 // pred_fallthru
    _
  // Predicated region
  $region34: #{mlp_forward.1} parent=0 // pred_check
    _
  $region35: #{mlp_forward.1} parent=0 // pred_check_branch
    %645 = sbr.rel (0) target = $region37
  $region36: #{mlp_forward.1} parent=0 // pred_region
    _
  $region37: #{mlp_forward.1} parent=0 // pred_fallthru
    _

</llo_original>
